<compile_context>
chip_gen: v7x
topology: tpu7x:2x2x1
jax: 0.10.0
libtpu: 0.0.40
codegen_flags: <defaults>
</compile_context>

<pallas_src>
import jax
import jax.numpy as jnp
from jax.experimental import pallas as pl
from jax.experimental.pallas import tpu as pltpu

LANES = 128


def _round_up(n, m):
    return ((n + m - 1) // m) * m


def _pick_tb(B, tb_max=2048, min_rows_per_split=512):
    """Pick the batch tile: as large as possible, but give v7x's two
    TensorCores >= 2 'parallel' grid steps when each step still has enough
    rows (>= min_rows_per_split) to amortize the per-step overhead."""
    tb = min(tb_max, _round_up(B, 8))
    if pl.cdiv(B, tb) < 2 and B >= 2 * min_rows_per_split:
        tb = _round_up(pl.cdiv(B, 2), 8)
    return tb


def _mlp_softmax_kernel(x_ref, w1_ref, b1_ref, w2_ref, b2_ref, out_ref):
    # In-kernel bf16 cast of the x tile (VPU has slack; saves a wrapper pass).
    x = x_ref[...].astype(jnp.bfloat16)

    # fcl1 + ReLU  (bf16 operands, f32 accumulate on the MXU)
    h = jnp.dot(x, w1_ref[...], preferred_element_type=jnp.float32)
    h = jnp.maximum(h + b1_ref[...], 0.0)               # (TB, H) + (1, H), f32

    # fcl2, class dim padded to 128 lanes (lane-dense MXU / full-vreg reduce)
    logits = jnp.dot(h.astype(jnp.bfloat16), w2_ref[...],
                     preferred_element_type=jnp.float32)
    logits = logits + b2_ref[...]                        # padded lanes: -1e30

    # numerically-stable softmax in f32; padded lanes -> exp(-huge) == 0
    m = jnp.max(logits, axis=-1, keepdims=True)
    e = jnp.exp(logits - m)
    denom = jnp.sum(e, axis=-1, keepdims=True)
    probs = e * pl.reciprocal(denom, approx=True)        # EUP slot

    # store only the real classes (narrow masked vst; tiny vs x read traffic)
    out_ref[...] = probs[:, : out_ref.shape[-1]].astype(out_ref.dtype)


def prepare_params(w1, b1, w2, b2):
    """One-time parameter prep (dtype cast + class-dim padding to 128 lanes).

    w1: (num_inp_feat, H), b1: (H,), w2: (H, C), b2: (C,)  -- W = W_pt.T layout.
    """
    H = w1.shape[1]
    C = w2.shape[1]
    Cp = _round_up(C, LANES)

    w1_bf = w1.astype(jnp.bfloat16)
    b1_2d = jnp.reshape(b1, (1, H)).astype(jnp.float32)

    w2_pad = jnp.zeros((H, Cp), jnp.bfloat16).at[:, :C].set(w2.astype(jnp.bfloat16))
    # padded class lanes get a hugely negative bias so softmax gives them ~0
    b2_pad = jnp.full((1, Cp), -1e30, jnp.float32).at[0, :C].set(b2.astype(jnp.float32))

    return w1_bf, b1_2d, w2_pad, b2_pad, C


def multi_classifier_forward(x, w1_bf, b1_2d, w2_pad, b2_pad, num_inp_feat,
                             num_classes, tb_max=2048, out_dtype=jnp.float32):
    """Forward pass.  x: any shape with prod(dims) % num_inp_feat == 0.
    x may be f32 or bf16; no wrapper-side cast pass is added for either."""
    x2d = jnp.reshape(x, (-1, num_inp_feat))
    if x2d.dtype not in (jnp.float32, jnp.bfloat16):
        x2d = x2d.astype(jnp.float32)
    B = x2d.shape[0]
    H = w1_bf.shape[1]
    Cp = w2_pad.shape[1]

    TB = _pick_tb(B, tb_max)
    grid = (pl.cdiv(B, TB),)          # non-dividing last block: writes masked

    out = pl.pallas_call(
        _mlp_softmax_kernel,
        out_shape=jax.ShapeDtypeStruct((B, num_classes), out_dtype),
        grid_spec=pltpu.PrefetchScalarGridSpec(
            num_scalar_prefetch=0,
            grid=grid,
            in_specs=[
                pl.BlockSpec((TB, num_inp_feat), lambda i: (i, 0)),   # x tile
                pl.BlockSpec((num_inp_feat, H), lambda i: (0, 0)),    # W1 resident
                pl.BlockSpec((1, H), lambda i: (0, 0)),               # b1 resident
                pl.BlockSpec((H, Cp), lambda i: (0, 0)),              # W2 resident
                pl.BlockSpec((1, Cp), lambda i: (0, 0)),              # b2 resident
            ],
            # last dim == full array extent (num_classes), so it is legal even
            # though it is < 128 lanes; rows of the partial last block are
            # masked on store.
            out_specs=pl.BlockSpec((TB, num_classes), lambda i: (i, 0)),
        ),
        compiler_params=pltpu.CompilerParams(
            dimension_semantics=("parallel",),     # shard batch steps across TCs
            vmem_limit_bytes=32 * 1024 * 1024,     # safe on v5e/v6e/v7x
        ),
    )(x2d, w1_bf, b1_2d, w2_pad, b2_pad)

    return out


if __name__ == "__main__":
    # Small MNIST-like config: 16x16 single-channel images -> 256 input features.
    B = 24
    num_inp_feat = 16 * 16   # 256
    num_neurons = 128
    num_classes = 10

    key = jax.random.PRNGKey(0)
    kx, kw1, kb1, kw2, kb2 = jax.random.split(key, 5)

    x = jax.random.normal(kx, (B, 1, 16, 16), dtype=jnp.float32)
    # parameters in y = x @ W + b layout (W = W_pt.T)
    w1 = jax.random.normal(kw1, (num_inp_feat, num_neurons), dtype=jnp.float32) * 0.05
    b1 = jax.random.normal(kb1, (num_neurons,), dtype=jnp.float32) * 0.05
    w2 = jax.random.normal(kw2, (num_neurons, num_classes), dtype=jnp.float32) * 0.05
    b2 = jax.random.normal(kb2, (num_classes,), dtype=jnp.float32) * 0.05

    # one-time parameter prep (outside the per-call hot path)
    w1_bf, b1_2d, w2_pad, b2_pad, _ = prepare_params(w1, b1, w2, b2)

    # tb_max=16 with B=24 -> grid=(2,) with a ragged last block: exercises the
    # multi-step pipeline, resident weights, in-kernel bf16 cast, and Pallas's
    # masked partial-block writes (no jnp.pad, no post-kernel slice).
    out = multi_classifier_forward(x, w1_bf, b1_2d, w2_pad, b2_pad,
                                   num_inp_feat, num_classes, tb_max=16)
    out = jax.block_until_ready(out)

    # sanity: shape/dtype, rows sum to ~1, and match a pure-JAX f32 reference
    assert out.shape == (B, num_classes)
    assert out.dtype == jnp.float32
    assert jnp.allclose(jnp.sum(out, axis=1), 1.0, atol=1e-2)

    x2d = jnp.reshape(x, (-1, num_inp_feat))
    ref_logits = jnp.maximum(x2d @ w1 + b1, 0.0) @ w2 + b2
    ref = jax.nn.softmax(ref_logits, axis=1)
    assert jnp.allclose(out, ref, atol=2e-2), float(jnp.max(jnp.abs(out - ref)))

    print("KERNEL_OK")
</pallas_src>

<mosaic_0001>
module attributes {stable_mosaic.version = 11 : i64} {
  func.func @_mlp_softmax_kernel(%arg0: i32, %arg1: memref<16x256xf32, #tpu.memory_space<vmem>>, %arg2: memref<256x128xbf16, #tpu.memory_space<vmem>>, %arg3: memref<1x128xf32, #tpu.memory_space<vmem>>, %arg4: memref<128x128xbf16, #tpu.memory_space<vmem>>, %arg5: memref<1x128xf32, #tpu.memory_space<vmem>>, %arg6: memref<16x10xf32, #tpu.memory_space<vmem>>) attributes {dimension_semantics = [#tpu.dimension_semantics<parallel>], iteration_bounds = array<i64: 2>, scalar_prefetch = 0 : i64, scratch_operands = 0 : i64, tpu.core_type = #tpu.core_type<tc>, window_params = [{transform_indices = @transform_0, window_bounds = array<i64: 16, 256>}, {pipeline_mode = #tpu.pipeline_mode<synchronous>, transform_indices = @transform_1, window_bounds = array<i64: 256, 128>}, {pipeline_mode = #tpu.pipeline_mode<synchronous>, transform_indices = @transform_2, window_bounds = array<i64: 1, 128>}, {pipeline_mode = #tpu.pipeline_mode<synchronous>, transform_indices = @transform_3, window_bounds = array<i64: 128, 128>}, {pipeline_mode = #tpu.pipeline_mode<synchronous>, transform_indices = @transform_4, window_bounds = array<i64: 1, 128>}, {transform_indices = @transform_5, window_bounds = array<i64: 16, 10>}]} {
    %c0 = arith.constant 0 : index
    %c0_0 = arith.constant 0 : index
    %0 = vector.load %arg1[%c0, %c0_0] : memref<16x256xf32, #tpu.memory_space<vmem>>, vector<16x256xf32>
    %1 = arith.truncf %0 : vector<16x256xf32> to vector<16x256xbf16>
    %c0_1 = arith.constant 0 : index
    %c0_2 = arith.constant 0 : index
    %2 = vector.load %arg2[%c0_1, %c0_2] : memref<256x128xbf16, #tpu.memory_space<vmem>>, vector<256x128xbf16>
    %cst = arith.constant dense<0.000000e+00> : vector<16x128xf32>
    %3 = tpu.matmul %1, %2, %cst {dimension_numbers = #tpu.dot_dimension_numbers<[1], [0], [0], [1], [0, 0, 1, 1], [], []>} : vector<16x256xbf16>, vector<256x128xbf16>, vector<16x128xf32> -> vector<16x128xf32>
    %c0_3 = arith.constant 0 : index
    %c0_4 = arith.constant 0 : index
    %4 = vector.load %arg3[%c0_3, %c0_4] : memref<1x128xf32, #tpu.memory_space<vmem>>, vector<1x128xf32>
    %5 = vector.broadcast %4 : vector<1x128xf32> to vector<16x128xf32>
    %6 = arith.addf %3, %5 : vector<16x128xf32>
    %cst_5 = arith.constant 0.000000e+00 : f32
    %7 = vector.broadcast %cst_5 : f32 to vector<16x128xf32>
    %8 = arith.maximumf %6, %7 : vector<16x128xf32>
    %9 = arith.truncf %8 : vector<16x128xf32> to vector<16x128xbf16>
    %c0_6 = arith.constant 0 : index
    %c0_7 = arith.constant 0 : index
    %10 = vector.load %arg4[%c0_6, %c0_7] : memref<128x128xbf16, #tpu.memory_space<vmem>>, vector<128x128xbf16>
    %cst_8 = arith.constant dense<0.000000e+00> : vector<16x128xf32>
    %11 = tpu.matmul %9, %10, %cst_8 {dimension_numbers = #tpu.dot_dimension_numbers<[1], [0], [0], [1], [0, 0, 1, 1], [], []>} : vector<16x128xbf16>, vector<128x128xbf16>, vector<16x128xf32> -> vector<16x128xf32>
    %c0_9 = arith.constant 0 : index
    %c0_10 = arith.constant 0 : index
    %12 = vector.load %arg5[%c0_9, %c0_10] : memref<1x128xf32, #tpu.memory_space<vmem>>, vector<1x128xf32>
    %13 = vector.broadcast %12 : vector<1x128xf32> to vector<16x128xf32>
    %14 = arith.addf %11, %13 : vector<16x128xf32>
    %cst_11 = arith.constant dense<0xFF800000> : vector<16xf32>
    %15 = vector.multi_reduction <maximumf>, %14, %cst_11 [1] : vector<16x128xf32> to vector<16xf32>
    %16 = vector.shape_cast %15 : vector<16xf32> to vector<16x1xf32>
    %17 = vector.broadcast %16 : vector<16x1xf32> to vector<16x128xf32>
    %18 = arith.subf %14, %17 : vector<16x128xf32>
    %19 = math.exp %18 : vector<16x128xf32>
    %cst_12 = arith.constant dense<0.000000e+00> : vector<16xf32>
    %20 = vector.multi_reduction <add>, %19, %cst_12 [1] : vector<16x128xf32> to vector<16xf32>
    %21 = vector.shape_cast %20 : vector<16xf32> to vector<16x1xf32>
    %22 = tpu.reciprocal %21 {approx = true} : vector<16x1xf32> -> vector<16x1xf32>
    %23 = vector.broadcast %22 : vector<16x1xf32> to vector<16x128xf32>
    %24 = arith.mulf %19, %23 : vector<16x128xf32>
    %25 = vector.extract_strided_slice %24 {offsets = [0, 0], sizes = [16, 10], strides = [1, 1]} : vector<16x128xf32> to vector<16x10xf32>
    %c0_13 = arith.constant 0 : index
    %c0_14 = arith.constant 0 : index
    %26 = vector.load %arg6[%c0_13, %c0_14] : memref<16x10xf32, #tpu.memory_space<vmem>>, vector<16x10xf32>
    tpu.vector_store %arg6[%c0_13, %c0_14], %25 {strides = array<i32>} : memref<16x10xf32, #tpu.memory_space<vmem>>, vector<16x10xf32>,
    return
  }
  func.func @transform_0(%arg0: i32) -> (i32, i32) {
    %c0_i32 = arith.constant 0 : i32
    %c0_i32_0 = arith.constant 0 : i32
    return %arg0, %c0_i32 : i32, i32
  }
  func.func @transform_1(%arg0: i32) -> (i32, i32) {
    %c0_i32 = arith.constant 0 : i32
    %c0_i32_0 = arith.constant 0 : i32
    %c0_i32_1 = arith.constant 0 : i32
    return %c0_i32, %c0_i32_0 : i32, i32
  }
  func.func @transform_2(%arg0: i32) -> (i32, i32) {
    %c0_i32 = arith.constant 0 : i32
    %c0_i32_0 = arith.constant 0 : i32
    %c0_i32_1 = arith.constant 0 : i32
    return %c0_i32, %c0_i32_0 : i32, i32
  }
  func.func @transform_3(%arg0: i32) -> (i32, i32) {
    %c0_i32 = arith.constant 0 : i32
    %c0_i32_0 = arith.constant 0 : i32
    %c0_i32_1 = arith.constant 0 : i32
    return %c0_i32, %c0_i32_0 : i32, i32
  }
  func.func @transform_4(%arg0: i32) -> (i32, i32) {
    %c0_i32 = arith.constant 0 : i32
    %c0_i32_0 = arith.constant 0 : i32
    %c0_i32_1 = arith.constant 0 : i32
    return %c0_i32, %c0_i32_0 : i32, i32
  }
  func.func @transform_5(%arg0: i32) -> (i32, i32) {
    %c0_i32 = arith.constant 0 : i32
    %c0_i32_0 = arith.constant 0 : i32
    return %arg0, %c0_i32 : i32, i32
  }
}

</mosaic_0001>

<llo_original>
// kernel: tpu_custom_call.1
$region0: #{tpu_custom_call.1}
  #allocation0 [shape = 'u32[]', space=smem, size = 0x4, offset = 0x4, fixed_abs, tag = 'smem constant byte address 0x4 - core index']
  #allocation1 [shape = 'u32[144,128]{1,0:T(1,128)}', space=vmem, size = 0x12000, scoped, tag = 'internal scratch']
  %s0 = inlined_call_operand.hbm [shape: f32[24,256], index: 0, kind: input, shape index: {}]
  %s1 = inlined_call_operand.hbm [shape: bf16[256,128], index: 1, kind: input, shape index: {}]
  %s2 = inlined_call_operand.vmem [shape: f32[1,128], index: 2, kind: input, shape index: {}]
  %s3 = inlined_call_operand.hbm [shape: bf16[128,128], index: 3, kind: input, shape index: {}]
  %s4 = inlined_call_operand.vmem [shape: f32[1,128], index: 4, kind: input, shape index: {}]
  %s5 = inlined_call_operand.vmem [shape: f32[24,10], index: 5, kind: output, shape index: {}]
  %s6 = sld [smem:[#allocation0]]
  $region113: #{tpu_custom_call.1} parent=0
    _
  %s8 = ssub.s32 1, %s6
  %s9 = scalar_select 0, %s8, %s6
  $region1: #{tpu_custom_call.1} parent=0
    #allocation2 [shape = 'u8[32768]{0}', space=vmem, size = 0x8000, scoped, tag = 'input window, operand 0']
    #allocation3 [shape = 's32[2]{0}', space=sflag, size = 0x8, scoped, tag = 'scoped memory for tpu_custom_call.1']
    #allocation4 [shape = 'u8[65536]{0}', space=vmem, size = 0x10000, scoped, tag = 'input window, operand 1, single buffered']
    #allocation5 [shape = 's32[1]{0}', space=sflag, size = 0x4, scoped, tag = 'scoped memory for tpu_custom_call.1']
    #allocation6 [shape = 'u8[32768]{0}', space=vmem, size = 0x8000, scoped, tag = 'input window, operand 3, single buffered']
    #allocation7 [shape = 'u8[16384]{0}', space=vmem, size = 0x4000, scoped, tag = 'output window, operand 0']
    %10 = vsyncpa [#allocation3], 0
    %s11 = scalar_lea.sflag [#allocation3], 1
    %12 = vsyncpa %s11, 0
    %13 = vsyncpa [#allocation5], 0
    loop: start=0, step=1, limit=4
    $region2: #{tpu_custom_call.1} parent=1 // loop_pre_header
      _
    $region3: #{tpu_custom_call.1} parent=1 // loop_header
      %s15 = sphi 0, %s19
      %p16 = scmp.ge.s32.totalorder %s15, 4
      %s25 = sphi 0, %s27
      %s28 = sphi 0, %s25
      %s29 = sphi 0, %s28
      %s45 = sphi 0, %s29
      %s49 = sphi 0, %s49
      %s51 = sphi 0, %s49
      %s52 = sphi 0, %s51
      %s66 = sphi 0, %s52
      %s70 = sphi 0, %s70
      %s72 = sphi 0, %s70
      %s73 = sphi 0, %s72
      %s87 = sphi 0, %s73
      %s91 = sphi 0, %s91
      %s93 = sphi 0, %s91
      %s94 = sphi 0, %s93
      %s108 = sphi 0, %s94
      %s112 = sphi 0, %s112
      %s114 = sphi 0, %s112
      %s115 = sphi 0, %s114
      %s129 = sphi 0, %s115
      %s135 = sphi 0, %s137
      %s138 = sphi 0, %s135
      %s139 = sphi 0, %s138
      %s155 = sphi 0, %s139
    $region4: #{tpu_custom_call.1} parent=1 // loop_header_branch
      %18 = sbr.rel (%p16) target = $region8
    $region5: #{tpu_custom_call.1} parent=1 // loop_body
      %s20 = ssub.s32 %s15, 1
      %s21 = ssub.s32 %s15, 2
      %s22 = sadd.s32 %s15, 1
      %s23 = ssub.s32 %s15, %s22
      %p24 = scmp.eq.s32.totalorder %s23, 0
      %s26 = sadd.s32 %s25, 1
      %s27 = scalar_select %p24, %s25, %s26
      %p30 = pneg %p24
      %p31 = scmp.eq.s32.totalorder %s15, 1
      %p32 = por %p30, %p31
      %p33 = scmp.ne.s32.totalorder %s25, %s28
      %p34 = scmp.eq.s32.totalorder %s15, 0
      %p35 = por %p33, %p34
      %p36 = scmp.ne.s32.totalorder %s25, %s28
      %p37 = scmp.eq.s32.totalorder %s20, 1
      %p38 = por %p36, %p37
      %p39 = scmp.ne.s32.totalorder %s28, %s29
      %p40 = scmp.eq.s32.totalorder %s20, 0
      %p41 = por %p39, %p40
      %p42 = scmp.ne.s32.totalorder %s28, %s29
      %p43 = scmp.eq.s32.totalorder %s21, 1
      %p44 = por %p42, %p43
      %p46 = scmp.ne.s32.totalorder %s29, %s45
      %p47 = scmp.eq.s32.totalorder %s21, 0
      %p48 = por %p46, %p47
      %s50 = sadd.s32 %s49, 1
      %p53 = scmp.eq.s32.totalorder %s15, 1
      %p54 = scmp.ne.s32.totalorder %s49, %s51
      %p55 = scmp.eq.s32.totalorder %s15, 0
      %p56 = por %p54, %p55
      %p57 = scmp.ne.s32.totalorder %s49, %s51
      %p58 = scmp.eq.s32.totalorder %s20, 1
      %p59 = por %p57, %p58
      %p60 = scmp.ne.s32.totalorder %s51, %s52
      %p61 = scmp.eq.s32.totalorder %s20, 0
      %p62 = por %p60, %p61
      %p63 = scmp.ne.s32.totalorder %s51, %s52
      %p64 = scmp.eq.s32.totalorder %s21, 1
      %p65 = por %p63, %p64
      %p67 = scmp.ne.s32.totalorder %s52, %s66
      %p68 = scmp.eq.s32.totalorder %s21, 0
      %p69 = por %p67, %p68
      %s71 = sadd.s32 %s70, 1
      %p74 = scmp.eq.s32.totalorder %s15, 1
      %p75 = scmp.ne.s32.totalorder %s70, %s72
      %p76 = scmp.eq.s32.totalorder %s15, 0
      %p77 = por %p75, %p76
      %p78 = scmp.ne.s32.totalorder %s70, %s72
      %p79 = scmp.eq.s32.totalorder %s20, 1
      %p80 = por %p78, %p79
      %p81 = scmp.ne.s32.totalorder %s72, %s73
      %p82 = scmp.eq.s32.totalorder %s20, 0
      %p83 = por %p81, %p82
      %p84 = scmp.ne.s32.totalorder %s72, %s73
      %p85 = scmp.eq.s32.totalorder %s21, 1
      %p86 = por %p84, %p85
      %p88 = scmp.ne.s32.totalorder %s73, %s87
      %p89 = scmp.eq.s32.totalorder %s21, 0
      %p90 = por %p88, %p89
      %s92 = sadd.s32 %s91, 1
      %p95 = scmp.eq.s32.totalorder %s15, 1
      %p96 = scmp.ne.s32.totalorder %s91, %s93
      %p97 = scmp.eq.s32.totalorder %s15, 0
      %p98 = por %p96, %p97
      %p99 = scmp.ne.s32.totalorder %s91, %s93
      %p100 = scmp.eq.s32.totalorder %s20, 1
      %p101 = por %p99, %p100
      %p102 = scmp.ne.s32.totalorder %s93, %s94
      %p103 = scmp.eq.s32.totalorder %s20, 0
      %p104 = por %p102, %p103
      %p105 = scmp.ne.s32.totalorder %s93, %s94
      %p106 = scmp.eq.s32.totalorder %s21, 1
      %p107 = por %p105, %p106
      %p109 = scmp.ne.s32.totalorder %s94, %s108
      %p110 = scmp.eq.s32.totalorder %s21, 0
      %p111 = por %p109, %p110
      %s113 = sadd.s32 %s112, 1
      %p116 = scmp.eq.s32.totalorder %s15, 1
      %p117 = scmp.ne.s32.totalorder %s112, %s114
      %p118 = scmp.eq.s32.totalorder %s15, 0
      %p119 = por %p117, %p118
      %p120 = scmp.ne.s32.totalorder %s112, %s114
      %p121 = scmp.eq.s32.totalorder %s20, 1
      %p122 = por %p120, %p121
      %p123 = scmp.ne.s32.totalorder %s114, %s115
      %p124 = scmp.eq.s32.totalorder %s20, 0
      %p125 = por %p123, %p124
      %p126 = scmp.ne.s32.totalorder %s114, %s115
      %p127 = scmp.eq.s32.totalorder %s21, 1
      %p128 = por %p126, %p127
      %p130 = scmp.ne.s32.totalorder %s115, %s129
      %p131 = scmp.eq.s32.totalorder %s21, 0
      %p132 = por %p130, %p131
      %s133 = ssub.s32 %s15, %s22
      %p134 = scmp.eq.s32.totalorder %s133, 0
      %s136 = sadd.s32 %s135, 1
      %s137 = scalar_select %p134, %s135, %s136
      %p140 = pneg %p134
      %p141 = scmp.eq.s32.totalorder %s15, 1
      %p142 = por %p140, %p141
      %p143 = scmp.ne.s32.totalorder %s135, %s138
      %p144 = scmp.eq.s32.totalorder %s15, 0
      %p145 = por %p143, %p144
      %p146 = scmp.ne.s32.totalorder %s135, %s138
      %p147 = scmp.eq.s32.totalorder %s20, 1
      %p148 = por %p146, %p147
      %p149 = scmp.ne.s32.totalorder %s138, %s139
      %p150 = scmp.eq.s32.totalorder %s20, 0
      %p151 = por %p149, %p150
      %p152 = scmp.ne.s32.totalorder %s138, %s139
      %p153 = scmp.eq.s32.totalorder %s21, 1
      %p154 = por %p152, %p153
      %p156 = scmp.ne.s32.totalorder %s139, %s155
      %p157 = scmp.eq.s32.totalorder %s21, 0
      %p158 = por %p156, %p157
      %p159 = scmp.le.s32.totalorder 1, %s15
      %p160 = scmp.lt.s32.totalorder %s15, 3
      %p161 = pnand %p159, %p160
      %p162 = pneg %p161
      // Predicated region
      $region9: #{tpu_custom_call.1} parent=5 // pred_check
        _
      $region10: #{tpu_custom_call.1} parent=5 // pred_check_branch
        %164 = sbr.rel (%p161) target = $region12
      $region11: #{tpu_custom_call.1} parent=5 // pred_region
        %s165 = ssub.s32 %s15, 1
        // Predicated region
        $region13: #{tpu_custom_call.1} parent=11 // pred_check
          %p166 = pneg %p62
        $region14: #{tpu_custom_call.1} parent=11 // pred_check_branch
          %168 = sbr.rel (%p166) target = $region16
        $region15: #{tpu_custom_call.1} parent=11 // pred_region
          %s170 = ssub.s32 2048, 2048
          %171 = vsyncadd [#allocation5], %s170
          %s172 = sshll.u32 [#allocation4], 4
          %s173 = int_to_ptr.vmem [resolvable:$true] %s172
          %178 = dma.hbm_to_vmem [thread:$0]  %s1, 2048, %s173, [#allocation5], 64, 64, 4
        $region16: #{tpu_custom_call.1} parent=11 // pred_fallthru
          _
        // Predicated region
        $region17: #{tpu_custom_call.1} parent=11 // pred_check
          %p179 = pneg %p83
        $region18: #{tpu_custom_call.1} parent=11 // pred_check_branch
          %181 = sbr.rel (%p179) target = $region20
        $region19: #{tpu_custom_call.1} parent=11 // pred_region
          _
        $region20: #{tpu_custom_call.1} parent=11 // pred_fallthru
          _
        // Predicated region
        $region21: #{tpu_custom_call.1} parent=11 // pred_check
          %p182 = pneg %p104
        $region22: #{tpu_custom_call.1} parent=11 // pred_check_branch
          %184 = sbr.rel (%p182) target = $region24
        $region23: #{tpu_custom_call.1} parent=11 // pred_region
          %s186 = ssub.s32 1024, 1024
          %187 = vsyncadd [#allocation5], %s186
          %s188 = sshll.u32 [#allocation6], 4
          %s189 = int_to_ptr.vmem [resolvable:$true] %s188
          %194 = dma.hbm_to_vmem [thread:$0]  %s3, 1024, %s189, [#allocation5], 64, 64, 4
        $region24: #{tpu_custom_call.1} parent=11 // pred_fallthru
          _
        // Predicated region
        $region25: #{tpu_custom_call.1} parent=11 // pred_check
          %p195 = pneg %p125
        $region26: #{tpu_custom_call.1} parent=11 // pred_check_branch
          %197 = sbr.rel (%p195) target = $region28
        $region27: #{tpu_custom_call.1} parent=11 // pred_region
          _
        $region28: #{tpu_custom_call.1} parent=11 // pred_fallthru
          _
      $region12: #{tpu_custom_call.1} parent=5 // pred_fallthru
        _
      %p198 = scmp.lt.s32.totalorder %s15, 2
      // Predicated region
      $region29: #{tpu_custom_call.1} parent=5 // pred_check
        %p199 = pneg %p198
      $region30: #{tpu_custom_call.1} parent=5 // pred_check_branch
        %201 = sbr.rel (%p199) target = $region32
      $region31: #{tpu_custom_call.1} parent=5 // pred_region
        // Predicated region
        $region33: #{tpu_custom_call.1} parent=31 // pred_check
          %p202 = pneg %p35
        $region34: #{tpu_custom_call.1} parent=31 // pred_check_branch
          %204 = sbr.rel (%p202) target = $region36
        $region35: #{tpu_custom_call.1} parent=31 // pred_region
          %s205 = sand.u32 %s25, 1
          %s206 = scalar_lea.sflag [#allocation3], %s205
          %s207 = sand.u32 %s25, 1
          %s208 = smul.addr %s207, 32
          %s209 = scalar_lea.vmem [#allocation2], %s208
          %s210 = smul.u32 2, %s15
          %s211 = ssub.s32 3, %s210
          %p212 = scmp.lt.s32.totalorder %s211, 2
          %s213 = scalar_select %p212, %s211, 2
          %s214 = smul.u32 128, %s213
          %s215 = smul.u32 %s214, 2
          %s217 = ssub.s32 512, %s215
          %218 = vsyncadd %s206, %s217
          %p219 = scmp.ne.s32.totalorder 0, %s215
          %s220 = smul.addr %s210, 2
          %s221 = smul.addr %s220, 128
          %s222 = scalar_lea.hbm %s0, %s221
          %s223 = smul.u32 16, %s213
          %s224 = sshll.u32 %s209, 4
          %s225 = int_to_ptr.vmem [resolvable:$true] %s224
          %s226 = sshll.u32 %s223, 4
          %230 = dma.hbm_to_vmem [thread:$0]  (%p219), %s222, %s226, %s225, %s206, 256, 256, 16
        $region36: #{tpu_custom_call.1} parent=31 // pred_fallthru
          _
      $region32: #{tpu_custom_call.1} parent=5 // pred_fallthru
        _
      %p231 = scmp.le.s32.totalorder 1, %s15
      %p232 = scmp.lt.s32.totalorder %s15, 3
      %p233 = pnand %p231, %p232
      %p234 = pneg %p233
      // Predicated region
      $region37: #{tpu_custom_call.1} parent=5 // pred_check
        _
      $region38: #{tpu_custom_call.1} parent=5 // pred_check_branch
        %236 = sbr.rel (%p233) target = $region40
      $region39: #{tpu_custom_call.1} parent=5 // pred_region
        %s237 = ssub.s32 %s15, 1
        %s238 = sand.u32 %s28, 1
        %s239 = scalar_lea.sflag [#allocation3], %s238
        %s240 = sand.u32 %s28, 1
        %s241 = smul.addr %s240, 32
        %s242 = scalar_lea.vmem [#allocation2], %s241
        // Predicated region
        $region41: #{tpu_custom_call.1} parent=39 // pred_check
          %p243 = pneg %p41
        $region42: #{tpu_custom_call.1} parent=39 // pred_check_branch
          %245 = sbr.rel (%p243) target = $region44
        $region43: #{tpu_custom_call.1} parent=39 // pred_region
          %246 = dma.done %s239, 512
        $region44: #{tpu_custom_call.1} parent=39 // pred_fallthru
          _
        // Predicated region
        $region45: #{tpu_custom_call.1} parent=39 // pred_check
          %p247 = pneg %p62
        $region46: #{tpu_custom_call.1} parent=39 // pred_check_branch
          %249 = sbr.rel (%p247) target = $region48
        $region47: #{tpu_custom_call.1} parent=39 // pred_region
          %250 = dma.done [#allocation5], 2048
        $region48: #{tpu_custom_call.1} parent=39 // pred_fallthru
          _
        // Predicated region
        $region49: #{tpu_custom_call.1} parent=39 // pred_check
          %p251 = pneg %p104
        $region50: #{tpu_custom_call.1} parent=39 // pred_check_branch
          %253 = sbr.rel (%p251) target = $region52
        $region51: #{tpu_custom_call.1} parent=39 // pred_region
          %254 = dma.done [#allocation5], 1024
        $region52: #{tpu_custom_call.1} parent=39 // pred_fallthru
          _
        %s255 = sand.u32 %s28, 1
        %s256 = scalar_lea.sflag [#allocation3], %s255
        %s257 = sand.u32 %s28, 1
        %s258 = smul.addr %s257, 32
        %s259 = scalar_lea.vmem [#allocation2], %s258
        %p260 = pneg %p41
        %p261 = pneg %p38
        %p262 = pneg %p62
        %p263 = pneg %p59
        %p264 = pneg %p83
        %p265 = pneg %p80
        %p266 = pneg %p104
        %p267 = pneg %p101
        %p268 = pneg %p125
        %p269 = pneg %p122
        %p270 = pneg %p151
        %p271 = pneg %p148
        %s272 = sand.u32 %s138, 1
        %s273 = sand.u32 %s138, 1
        %s274 = smul.addr %s273, 16
        %s275 = scalar_lea.vmem [#allocation7], %s274
        %s276 = smul.u32 2, %s20
        %s277 = ssub.s32 3, %s276
        %p278 = scmp.lt.s32.totalorder %s277, 2
        %s279 = scalar_select %p278, %s277, 2
        %s280 = smul.u32 128, %s279
        %s281 = smul.u32 %s280, 2
        %s282 = smul.u32 2, %s20
        %s283 = ssub.s32 3, %s282
        %p284 = scmp.lt.s32.totalorder %s283, 2
        %s285 = scalar_select %p284, %s283, 2
        %s286 = smul.u32 128, %s285
        %v288 = vld [vmem:[%s242] sm:$0xff]
        %v289 = vld [vmem:[%s242 + $0x8] sm:$0xff]
        %v290 = vld [vmem:[%s242 + $0x10] sm:$0xff]
        %v291 = vld [vmem:[%s242 + $0x18] sm:$0xff]
        %v292 = vpack.c.bf16 %v290, %v288
        %v293 = vpack.c.bf16 %v291, %v289
        %v294 = vld [vmem:[#allocation4] sm:$0xf]
        %v295 = vld [vmem:[#allocation4 + $0x4] sm:$0xf]
        %v296 = vld [vmem:[#allocation4 + $0x8] sm:$0xf]
        %v297 = vld [vmem:[#allocation4 + $0xc] sm:$0xf]
        %v298 = vld [vmem:[#allocation4 + $0x10] sm:$0xf]
        %v299 = vld [vmem:[#allocation4 + $0x14] sm:$0xf]
        %v300 = vld [vmem:[#allocation4 + $0x18] sm:$0xf]
        %v301 = vld [vmem:[#allocation4 + $0x1c] sm:$0xf]
        %v302 = vld [vmem:[#allocation4 + $0x20] sm:$0xf]
        %v303 = vld [vmem:[#allocation4 + $0x24] sm:$0xf]
        %v304 = vld [vmem:[#allocation4 + $0x28] sm:$0xf]
        %v305 = vld [vmem:[#allocation4 + $0x2c] sm:$0xf]
        %v306 = vld [vmem:[#allocation4 + $0x30] sm:$0xf]
        %v307 = vld [vmem:[#allocation4 + $0x34] sm:$0xf]
        %v308 = vld [vmem:[#allocation4 + $0x38] sm:$0xf]
        %v309 = vld [vmem:[#allocation4 + $0x3c] sm:$0xf]
        %v310 = vld [vmem:[#allocation4 + $0x40] sm:$0xf]
        %v311 = vld [vmem:[#allocation4 + $0x44] sm:$0xf]
        %v312 = vld [vmem:[#allocation4 + $0x48] sm:$0xf]
        %v313 = vld [vmem:[#allocation4 + $0x4c] sm:$0xf]
        %v314 = vld [vmem:[#allocation4 + $0x50] sm:$0xf]
        %v315 = vld [vmem:[#allocation4 + $0x54] sm:$0xf]
        %v316 = vld [vmem:[#allocation4 + $0x58] sm:$0xf]
        %v317 = vld [vmem:[#allocation4 + $0x5c] sm:$0xf]
        %v318 = vld [vmem:[#allocation4 + $0x60] sm:$0xf]
        %v319 = vld [vmem:[#allocation4 + $0x64] sm:$0xf]
        %v320 = vld [vmem:[#allocation4 + $0x68] sm:$0xf]
        %v321 = vld [vmem:[#allocation4 + $0x6c] sm:$0xf]
        %v322 = vld [vmem:[#allocation4 + $0x70] sm:$0xf]
        %v323 = vld [vmem:[#allocation4 + $0x74] sm:$0xf]
        %v324 = vld [vmem:[#allocation4 + $0x78] sm:$0xf]
        %v325 = vld [vmem:[#allocation4 + $0x7c] sm:$0xf]
        %v326 = vld [vmem:[%s2] sm:$0x1]
        %v328 = vlaneseq
        %v329 = vshrl.u32 %v328, 7
        %v330 = vsub.s32 0, %v329
        %v331 = vrot.slane %v326, %v330
        %v365 = vunpack.c.l.b16 %v294
        %v366 = vunpack.c.l.b16 %v295
        %v367 = vunpack.c.l.b16 %v296
        %v368 = vunpack.c.l.b16 %v297
        %v369 = vunpack.c.l.b16 %v298
        %v370 = vunpack.c.l.b16 %v299
        %v371 = vunpack.c.l.b16 %v300
        %v372 = vunpack.c.l.b16 %v301
        %v373 = vunpack.c.l.b16 %v302
        %v374 = vunpack.c.l.b16 %v303
        %v375 = vunpack.c.l.b16 %v304
        %v376 = vunpack.c.l.b16 %v305
        %v377 = vunpack.c.l.b16 %v306
        %v378 = vunpack.c.l.b16 %v307
        %v379 = vunpack.c.l.b16 %v308
        %v380 = vunpack.c.l.b16 %v309
        %v381 = vunpack.c.l.b16 %v310
        %v382 = vunpack.c.l.b16 %v311
        %v383 = vunpack.c.l.b16 %v312
        %v384 = vunpack.c.l.b16 %v313
        %v385 = vunpack.c.l.b16 %v314
        %v386 = vunpack.c.l.b16 %v315
        %v387 = vunpack.c.l.b16 %v316
        %v388 = vunpack.c.l.b16 %v317
        %v389 = vunpack.c.l.b16 %v318
        %v390 = vunpack.c.l.b16 %v319
        %v391 = vunpack.c.l.b16 %v320
        %v392 = vunpack.c.l.b16 %v321
        %v393 = vunpack.c.l.b16 %v322
        %v394 = vunpack.c.l.b16 %v323
        %v395 = vunpack.c.l.b16 %v324
        %v396 = vunpack.c.l.b16 %v325
        %v397 = vpack.c.b16 %v366, %v365
        %v398 = vpack.c.b16 %v368, %v367
        %v399 = vpack.c.b16 %v370, %v369
        %v400 = vpack.c.b16 %v372, %v371
        %v401 = vpack.c.b16 %v374, %v373
        %v402 = vpack.c.b16 %v376, %v375
        %v403 = vpack.c.b16 %v378, %v377
        %v404 = vpack.c.b16 %v380, %v379
        %v405 = vpack.c.b16 %v382, %v381
        %v406 = vpack.c.b16 %v384, %v383
        %v407 = vpack.c.b16 %v386, %v385
        %v408 = vpack.c.b16 %v388, %v387
        %v409 = vpack.c.b16 %v390, %v389
        %v410 = vpack.c.b16 %v392, %v391
        %v411 = vpack.c.b16 %v394, %v393
        %v412 = vpack.c.b16 %v396, %v395
        %429 = vmatprep.subr.bf16.mxu0 0
        %430 = vmatpush1.bf16.msra.mxu0 %v397
        %431 = vmatprep.subr.bf16.mxu0 0
        %432 = vmatpush1.bf16.msra.mxu0 %v398
        %433 = vmatprep.subr.bf16.mxu0 0
        %434 = vmatpush1.bf16.msra.mxu0 %v399
        %435 = vmatprep.subr.bf16.mxu0 0
        %436 = vmatpush1.bf16.msra.mxu0 %v400
        %437 = vmatprep.subr.bf16.mxu0 0
        %438 = vmatpush1.bf16.msra.mxu0 %v401
        %439 = vmatprep.subr.bf16.mxu0 0
        %440 = vmatpush1.bf16.msra.mxu0 %v402
        %441 = vmatprep.subr.bf16.mxu0 0
        %442 = vmatpush1.bf16.msra.mxu0 %v403
        %443 = vmatprep.subr.bf16.mxu0 0
        %444 = vmatpush1.bf16.msra.mxu0 %v404
        %445 = vmatprep.subr.bf16.mxu0 0
        %446 = vmatpush1.bf16.msra.mxu0 %v405
        %447 = vmatprep.subr.bf16.mxu0 0
        %448 = vmatpush1.bf16.msra.mxu0 %v406
        %449 = vmatprep.subr.bf16.mxu0 0
        %450 = vmatpush1.bf16.msra.mxu0 %v407
        %451 = vmatprep.subr.bf16.mxu0 0
        %452 = vmatpush1.bf16.msra.mxu0 %v408
        %453 = vmatprep.subr.bf16.mxu0 0
        %454 = vmatpush1.bf16.msra.mxu0 %v409
        %455 = vmatprep.subr.bf16.mxu0 0
        %456 = vmatpush1.bf16.msra.mxu0 %v410
        %457 = vmatprep.subr.bf16.mxu0 0
        %458 = vmatpush1.bf16.msra.mxu0 %v411
        %459 = vmatprep.subr.bf16.mxu0 0
        %460 = vmatpush1.bf16.msra.mxu0 %v412
        %461 = vmatprep.mubr.bf16.mxu0 %v293
        %462 = vmatmul.mubr.bf16.gmra.mrb[0].mxu0 %v292
        %v463 = vpop.f32.mrb[0].mxu0
        %v464 = vadd.f32 %v331, %v463
        %v465 = vpop.f32.mrb[0].mxu0
        %v466 = vpop.f32.mrb[0].mxu0
        %v467 = vadd.f32 %v331, %v466
        %v468 = vpop.f32.mrb[0].mxu0
        %469 = vdwg.mxu0
        %v470 = vmax.f32 %v464, 0.0
        %v471 = vmax.f32 %v467, 0.0
        %v472 = vpack.c.bf16 %v471, %v470
        %v473 = vld [vmem:[#allocation6] sm:$0xf]
        %v474 = vld [vmem:[#allocation6 + $0x4] sm:$0xf]
        %v475 = vld [vmem:[#allocation6 + $0x8] sm:$0xf]
        %v476 = vld [vmem:[#allocation6 + $0xc] sm:$0xf]
        %v477 = vld [vmem:[#allocation6 + $0x10] sm:$0xf]
        %v478 = vld [vmem:[#allocation6 + $0x14] sm:$0xf]
        %v479 = vld [vmem:[#allocation6 + $0x18] sm:$0xf]
        %v480 = vld [vmem:[#allocation6 + $0x1c] sm:$0xf]
        %v481 = vld [vmem:[#allocation6 + $0x20] sm:$0xf]
        %v482 = vld [vmem:[#allocation6 + $0x24] sm:$0xf]
        %v483 = vld [vmem:[#allocation6 + $0x28] sm:$0xf]
        %v484 = vld [vmem:[#allocation6 + $0x2c] sm:$0xf]
        %v485 = vld [vmem:[#allocation6 + $0x30] sm:$0xf]
        %v486 = vld [vmem:[#allocation6 + $0x34] sm:$0xf]
        %v487 = vld [vmem:[#allocation6 + $0x38] sm:$0xf]
        %v488 = vld [vmem:[#allocation6 + $0x3c] sm:$0xf]
        %v489 = vld [vmem:[%s4] sm:$0x1]
        %v491 = vlaneseq
        %v492 = vshrl.u32 %v491, 7
        %v493 = vsub.s32 0, %v492
        %v494 = vrot.slane %v489, %v493
        %v512 = vunpack.c.l.b16 %v473
        %v513 = vunpack.c.l.b16 %v474
        %v514 = vunpack.c.l.b16 %v475
        %v515 = vunpack.c.l.b16 %v476
        %v516 = vunpack.c.l.b16 %v477
        %v517 = vunpack.c.l.b16 %v478
        %v518 = vunpack.c.l.b16 %v479
        %v519 = vunpack.c.l.b16 %v480
        %v520 = vunpack.c.l.b16 %v481
        %v521 = vunpack.c.l.b16 %v482
        %v522 = vunpack.c.l.b16 %v483
        %v523 = vunpack.c.l.b16 %v484
        %v524 = vunpack.c.l.b16 %v485
        %v525 = vunpack.c.l.b16 %v486
        %v526 = vunpack.c.l.b16 %v487
        %v527 = vunpack.c.l.b16 %v488
        %v528 = vpack.c.b16 %v513, %v512
        %v529 = vpack.c.b16 %v515, %v514
        %v530 = vpack.c.b16 %v517, %v516
        %v531 = vpack.c.b16 %v519, %v518
        %v532 = vpack.c.b16 %v521, %v520
        %v533 = vpack.c.b16 %v523, %v522
        %v534 = vpack.c.b16 %v525, %v524
        %v535 = vpack.c.b16 %v527, %v526
        %544 = vmatprep.subr.bf16.mxu0 0
        %545 = vmatpush1.bf16.msra.mxu0 %v528
        %546 = vmatprep.subr.bf16.mxu0 0
        %547 = vmatpush1.bf16.msra.mxu0 %v529
        %548 = vmatprep.subr.bf16.mxu0 0
        %549 = vmatpush1.bf16.msra.mxu0 %v530
        %550 = vmatprep.subr.bf16.mxu0 0
        %551 = vmatpush1.bf16.msra.mxu0 %v531
        %552 = vmatprep.subr.bf16.mxu0 0
        %553 = vmatpush1.bf16.msra.mxu0 %v532
        %554 = vmatprep.subr.bf16.mxu0 0
        %555 = vmatpush1.bf16.msra.mxu0 %v533
        %556 = vmatprep.subr.bf16.mxu0 0
        %557 = vmatpush1.bf16.msra.mxu0 %v534
        %558 = vmatprep.subr.bf16.mxu0 0
        %559 = vmatpush1.bf16.msra.mxu0 %v535
        %560 = vmatprep.subr.bf16.mxu0 0
        %561 = vmatpush1.bf16.msra.mxu0 0
        %562 = vmatprep.subr.bf16.mxu0 0
        %563 = vmatpush1.bf16.msra.mxu0 0
        %564 = vmatprep.subr.bf16.mxu0 0
        %565 = vmatpush1.bf16.msra.mxu0 0
        %566 = vmatprep.subr.bf16.mxu0 0
        %567 = vmatpush1.bf16.msra.mxu0 0
        %568 = vmatprep.subr.bf16.mxu0 0
        %569 = vmatpush1.bf16.msra.mxu0 0
        %570 = vmatprep.subr.bf16.mxu0 0
        %571 = vmatpush1.bf16.msra.mxu0 0
        %572 = vmatprep.subr.bf16.mxu0 0
        %573 = vmatpush1.bf16.msra.mxu0 0
        %574 = vmatprep.subr.bf16.mxu0 0
        %575 = vmatpush1.bf16.msra.mxu0 0
        %576 = vmatprep.mubr.bf16.mxu0 0
        %577 = vmatmul.mubr.bf16.gmra.mrb[0].mxu0 %v472
        %v578 = vpop.f32.mrb[0].mxu0
        %v579 = vadd.f32 %v494, %v578
        %v580 = vpop.f32.mrb[0].mxu0
        %v581 = vpop.f32.mrb[0].mxu0
        %v582 = vadd.f32 %v494, %v581
        %v583 = vpop.f32.mrb[0].mxu0
        %584 = vdwg.mxu0
        %585 = vmax.xlane.f32.xlu0 %v579
        %v586 = vpop.xlane.xlu0 %585
        %587 = vmax.xlane.f32.xlu0 %v582
        %v588 = vpop.xlane.xlu0 %587
        %v589 = vsub.f32 %v579, %v586
        %v590 = vsub.f32 %v582, %v588
        %v591 = vmul.f32 %v589, 1.442695
        %v592 = vpow.pop %v591
        %v593 = vmul.f32 %v590, 1.442695
        %v594 = vpow.pop %v593
        %595 = vadd.xlane.f32.xlu0 %v592
        %v596 = vpop.xlane.xlu0 %595
        %597 = vadd.xlane.f32.xlu0 %v594
        %v598 = vpop.xlane.xlu0 %597
        %v599 = vrcp.pop %v596
        %v600 = vrcp.pop %v598
        %v601 = vmul.f32 %v592, %v599
        %v602 = vmul.f32 %v594, %v600
        %vm603 = vcmask 80896
        %604 = vst.msk [vmem:[%s275] sm:$0xff] %vm603, %v601
        %605 = vst.msk [vmem:[%s275 + $0x8] sm:$0xff] %vm603, %v602
        %s606 = sand.u32 %s138, 1
        %s607 = sand.u32 %s138, 1
        %s608 = smul.addr %s607, 16
        %s609 = scalar_lea.vmem [#allocation7], %s608
        // Predicated region
        $region53: #{tpu_custom_call.1} parent=39 // pred_check
          %p610 = pneg %p148
        $region54: #{tpu_custom_call.1} parent=39 // pred_check_branch
          %612 = sbr.rel (%p610) target = $region56
        $region55: #{tpu_custom_call.1} parent=39 // pred_region
          %s613 = smul.u32 2, %s20
          %s614 = ssub.s32 3, %s613
          %p615 = scmp.lt.s32.totalorder %s614, 2
          %s616 = scalar_select %p615, %s614, 2
          %s617 = smul.u32 128, %s616
          %p618 = scmp.ne.s32.totalorder 0, %s617
          %s619 = smul.addr %s613, 8
          %s620 = scalar_lea.vmem %s5, %s619
          // Predicated region
          $region57: #{tpu_custom_call.1} parent=55 // pred_check
            %p621 = pneg %p618
          $region58: #{tpu_custom_call.1} parent=55 // pred_check_branch
            %623 = sbr.rel (%p621) target = $region60
          $region59: #{tpu_custom_call.1} parent=55 // pred_region
            // Predicated region
            $region61: #{tpu_custom_call.1} parent=59 // pred_check
              _
            $region62: #{tpu_custom_call.1} parent=59 // pred_check_branch
              %625 = sbr.rel (0) target = $region64
            $region63: #{tpu_custom_call.1} parent=59 // pred_region
              // Predicated region
              $region83: #{tpu_custom_call.1} parent=63 // pred_check
                _
              $region84: #{tpu_custom_call.1} parent=63 // pred_check_branch
                %676 = sbr.rel (0) target = $region86
              $region85: #{tpu_custom_call.1} parent=63 // pred_region
                %s677 = sshrl.u32 %s616, 1
                // While loop
                $region87: #{tpu_custom_call.1} parent=85 // loop_pre_header
                  _
                $region88: #{tpu_custom_call.1} parent=85 // loop_header
                  %s679 = sphi 0, %s681
                  %p680 = scmp.ge.s32.totalorder %s679, %s677
                  %s684 = sphi 0, %s693
                  %s685 = sphi %s609, %s696
                  %s686 = sphi %s620, %s697
                $region89: #{tpu_custom_call.1} parent=85 // loop_header_branch
                  %683 = sbr.rel (%p680) target = $region93
                $region90: #{tpu_custom_call.1} parent=85 // loop_body
                  %v687 = vld [vmem:[%s685] sm:$0xff]
                  %688 = vst [vmem:[%s686] sm:$0xff] %v687
                  %v689 = vld [vmem:[%s685 + $0x8] sm:$0xff]
                  %690 = vst [vmem:[%s686 + $0x8] sm:$0xff] %v689
                  %s691 = sadd.s32 1, %s684
                  %p692 = scmp.ge.s32.totalorder %s691, %s677
                  %s693 = scalar_select %p692, 0, %s691
                  %s694 = smul.u32 %s693, 16
                  %s695 = smul.u32 %s693, 16
                  %s696 = scalar_lea.vmem %s609, %s694 [#allocation7]
                  %s697 = scalar_lea.vmem %s620, %s695
                $region91: #{tpu_custom_call.1} parent=85 // loop_footer
                  %s681 = sadd.s32 %s679, 1
                $region92: #{tpu_custom_call.1} parent=85 // loop_footer_branch
                  %678 = sbr.rel target = $region88
                $region93: #{tpu_custom_call.1} parent=85 // loop_exit
                  _
                %s698 = sshrl.u32 %s616, 1
                %s699 = sand.u32 %s616, 1
                %s700 = smul.u32 %s698, 2
                %s701 = smul.u32 8, %s700
                %s702 = scalar_lea.vmem %s609, %s701 [#allocation7]
                %s703 = smul.u32 8, %s700
                %s704 = scalar_lea.vmem %s620, %s703
                // While loop
                $region94: #{tpu_custom_call.1} parent=85 // loop_pre_header
                  _
                $region95: #{tpu_custom_call.1} parent=85 // loop_header
                  %s706 = sphi 0, %s708
                  %p707 = scmp.ge.s32.totalorder %s706, %s699
                  %s711 = sphi 0, %s718
                  %s712 = sphi %s702, %s721
                  %s713 = sphi %s704, %s722
                $region96: #{tpu_custom_call.1} parent=85 // loop_header_branch
                  %710 = sbr.rel (%p707) target = $region100
                $region97: #{tpu_custom_call.1} parent=85 // loop_body
                  %v714 = vld [vmem:[%s712] sm:$0xff]
                  %715 = vst [vmem:[%s713] sm:$0xff] %v714
                  %s716 = sadd.s32 1, %s711
                  %p717 = scmp.ge.s32.totalorder %s716, %s699
                  %s718 = scalar_select %p717, 0, %s716
                  %s719 = smul.u32 %s718, 8
                  %s720 = smul.u32 %s718, 8
                  %s721 = scalar_lea.vmem %s702, %s719 [#allocation7]
                  %s722 = scalar_lea.vmem %s704, %s720
                $region98: #{tpu_custom_call.1} parent=85 // loop_footer
                  %s708 = sadd.s32 %s706, 1
                $region99: #{tpu_custom_call.1} parent=85 // loop_footer_branch
                  %705 = sbr.rel target = $region95
                $region100: #{tpu_custom_call.1} parent=85 // loop_exit
                  _
              $region86: #{tpu_custom_call.1} parent=63 // pred_fallthru
                _
              // Predicated region
              $region101: #{tpu_custom_call.1} parent=63 // pred_check
                _
              $region102: #{tpu_custom_call.1} parent=63 // pred_check_branch
                %724 = sbr.rel target = $region104
              $region103: #{tpu_custom_call.1} parent=63 // pred_region
                _
              $region104: #{tpu_custom_call.1} parent=63 // pred_fallthru
                _
            $region64: #{tpu_custom_call.1} parent=59 // pred_fallthru
              _
            // Predicated region
            $region65: #{tpu_custom_call.1} parent=59 // pred_check
              _
            $region66: #{tpu_custom_call.1} parent=59 // pred_check_branch
              %627 = sbr.rel target = $region68
            $region67: #{tpu_custom_call.1} parent=59 // pred_region
              %s629 = sshrl.u32 %s616, 1
              // While loop
              $region69: #{tpu_custom_call.1} parent=67 // loop_pre_header
                _
              $region70: #{tpu_custom_call.1} parent=67 // loop_header
                %s631 = sphi 0, %s633
                %p632 = scmp.ge.s32.totalorder %s631, %s629
                %s636 = sphi 0, %s645
                %s637 = sphi %s609, %s648
                %s638 = sphi %s620, %s649
              $region71: #{tpu_custom_call.1} parent=67 // loop_header_branch
                %635 = sbr.rel (%p632) target = $region75
              $region72: #{tpu_custom_call.1} parent=67 // loop_body
                %v639 = vld [vmem:[%s637] sm:$0xff]
                %640 = vst [vmem:[%s638] sm:$0xff] %v639
                %v641 = vld [vmem:[%s637 + $0x8] sm:$0xff]
                %642 = vst [vmem:[%s638 + $0x8] sm:$0xff] %v641
                %s643 = sadd.s32 1, %s636
                %p644 = scmp.ge.s32.totalorder %s643, %s629
                %s645 = scalar_select %p644, 0, %s643
                %s646 = smul.u32 %s645, 16
                %s647 = smul.u32 %s645, 16
                %s648 = scalar_lea.vmem %s609, %s646 [#allocation7]
                %s649 = scalar_lea.vmem %s620, %s647
              $region73: #{tpu_custom_call.1} parent=67 // loop_footer
                %s633 = sadd.s32 %s631, 1
              $region74: #{tpu_custom_call.1} parent=67 // loop_footer_branch
                %630 = sbr.rel target = $region70
              $region75: #{tpu_custom_call.1} parent=67 // loop_exit
                _
              %s650 = sshrl.u32 %s616, 1
              %s651 = sand.u32 %s616, 1
              %s652 = smul.u32 %s650, 2
              %s653 = smul.u32 8, %s652
              %s654 = scalar_lea.vmem %s609, %s653 [#allocation7]
              %s655 = smul.u32 8, %s652
              %s656 = scalar_lea.vmem %s620, %s655
              // While loop
              $region76: #{tpu_custom_call.1} parent=67 // loop_pre_header
                _
              $region77: #{tpu_custom_call.1} parent=67 // loop_header
                %s658 = sphi 0, %s660
                %p659 = scmp.ge.s32.totalorder %s658, %s651
                %s663 = sphi 0, %s670
                %s664 = sphi %s654, %s673
                %s665 = sphi %s656, %s674
              $region78: #{tpu_custom_call.1} parent=67 // loop_header_branch
                %662 = sbr.rel (%p659) target = $region82
              $region79: #{tpu_custom_call.1} parent=67 // loop_body
                %v666 = vld [vmem:[%s664] sm:$0xff]
                %667 = vst [vmem:[%s665] sm:$0xff] %v666
                %s668 = sadd.s32 1, %s663
                %p669 = scmp.ge.s32.totalorder %s668, %s651
                %s670 = scalar_select %p669, 0, %s668
                %s671 = smul.u32 %s670, 8
                %s672 = smul.u32 %s670, 8
                %s673 = scalar_lea.vmem %s654, %s671 [#allocation7]
                %s674 = scalar_lea.vmem %s656, %s672
              $region80: #{tpu_custom_call.1} parent=67 // loop_footer
                %s660 = sadd.s32 %s658, 1
              $region81: #{tpu_custom_call.1} parent=67 // loop_footer_branch
                %657 = sbr.rel target = $region77
              $region82: #{tpu_custom_call.1} parent=67 // loop_exit
                _
            $region68: #{tpu_custom_call.1} parent=59 // pred_fallthru
              _
          $region60: #{tpu_custom_call.1} parent=55 // pred_fallthru
            _
          %725 = vnop
        $region56: #{tpu_custom_call.1} parent=39 // pred_fallthru
          _
      $region40: #{tpu_custom_call.1} parent=5 // pred_fallthru
        _
      %p726 = scmp.le.s32.totalorder 2, %s15
      // Predicated region
      $region105: #{tpu_custom_call.1} parent=5 // pred_check
        %p727 = pneg %p726
      $region106: #{tpu_custom_call.1} parent=5 // pred_check_branch
        %729 = sbr.rel (%p727) target = $region108
      $region107: #{tpu_custom_call.1} parent=5 // pred_region
        %s730 = ssub.s32 %s15, 2
        // Predicated region
        $region109: #{tpu_custom_call.1} parent=107 // pred_check
          %p731 = pneg %p154
        $region110: #{tpu_custom_call.1} parent=107 // pred_check_branch
          %733 = sbr.rel (%p731) target = $region112
        $region111: #{tpu_custom_call.1} parent=107 // pred_region
          %s734 = sand.u32 %s139, 1
          %s735 = sand.u32 %s139, 1
          %s736 = smul.addr %s735, 16
          %s737 = scalar_lea.vmem [#allocation7], %s736
        $region112: #{tpu_custom_call.1} parent=107 // pred_fallthru
          _
      $region108: #{tpu_custom_call.1} parent=5 // pred_fallthru
        _
    $region6: #{tpu_custom_call.1} parent=1 // loop_footer
      %s19 = sadd.s32 1, %s15
    $region7: #{tpu_custom_call.1} parent=1 // loop_footer_branch
      %14 = sbr.rel target = $region3
    $region8: #{tpu_custom_call.1} parent=1 // loop_exit
      _
    %738 = vsyncpa [#allocation3], 1
    %s739 = scalar_lea.sflag [#allocation3], 1
    %740 = vsyncpa %s739, 1
    %741 = vsyncpa [#allocation5], 1

</llo_original>
